<compile_context>
chip_gen: v7x
topology: tpu7x:2x2x1
jax: 0.10.0
libtpu: 0.0.40
codegen_flags: <defaults>
</compile_context>

<pallas_src>
import functools

import jax
import jax.numpy as jnp
from jax import lax
from jax.experimental import pallas as pl
from jax.experimental.pallas import tpu as pltpu


def _round_up(x, m):
    return (x + m - 1) // m * m


def _layernorm_kernel(x_ref, w_ref, b_ref, o_ref, *, c_true, eps, bias_free):
    # x_ref: (1, C, t_hw) -- channels on sublanes, spatial positions on lanes.
    # w_ref / b_ref: (C, 1) -- broadcast over lanes.
    x = x_ref[...].astype(jnp.float32)
    inv_c = jnp.float32(1.0 / c_true)

    mu = jnp.sum(x, axis=1, keepdims=True) * inv_c            # (1, 1, t_hw)
    xc = x - mu
    var = jnp.sum(xc * xc, axis=1, keepdims=True) * inv_c     # biased variance
    inv_sigma = lax.rsqrt(var + jnp.float32(eps))             # single EUP op

    w = w_ref[...].astype(jnp.float32)                        # (C, 1)
    if bias_free:
        # BiasFree: normalize un-centered x (mean only enters via the variance).
        y = x * inv_sigma * w
    else:
        y = xc * inv_sigma * w + b_ref[...].astype(jnp.float32)
    o_ref[...] = y.astype(o_ref.dtype)


def layernorm_pallas(x, weight, bias=None, *, bias_free=False, eps=1e-5):
    """Restormer LayerNorm. x: (B, C, H, W); weight/bias: (C,)."""
    B, C, H, W = x.shape
    HW = H * W
    out_dtype = x.dtype
    itemsize = jnp.dtype(out_dtype).itemsize

    # Free, contiguous reshape: channels -> sublanes, spatial -> lanes.
    x3 = x.reshape(B, C, HW)

    # Lane-tile selection: target ~1 MiB per block (well under the double-
    # buffered v7x 32 MiB default scoped VMEM), multiple of 128 lanes.
    budget_bytes = 1 << 20
    t_cap = max(128, (budget_bytes // (C * itemsize)) // 128 * 128)
    t_cap = min(t_cap, 16384)
    if HW <= t_cap:
        t_hw = _round_up(HW, 128)          # single full-extent lane tile
    else:
        t_hw = t_cap
    HW_pad = _round_up(HW, t_hw)
    if HW_pad != HW:
        x3 = jnp.pad(x3, ((0, 0), (0, 0), (0, HW_pad - HW)))

    if bias is None:
        bias = jnp.zeros((C,), dtype=weight.dtype)
    w2 = weight.reshape(C, 1)
    b2 = bias.reshape(C, 1)

    kernel = functools.partial(
        _layernorm_kernel, c_true=C, eps=float(eps), bias_free=bias_free)

    cost = pl.CostEstimate(
        flops=8 * B * C * HW_pad,          # sums, center, square, scale, affine
        transcendentals=B * HW_pad,        # one rsqrt per spatial position
        bytes_accessed=(2 * B * C * HW_pad + 2 * C) * itemsize)

    out = pl.pallas_call(
        kernel,
        out_shape=jax.ShapeDtypeStruct((B, C, HW_pad), out_dtype),
        grid_spec=pltpu.PrefetchScalarGridSpec(
            num_scalar_prefetch=0,
            grid=(B, HW_pad // t_hw),
            in_specs=[
                pl.BlockSpec((1, C, t_hw), lambda b, i: (b, 0, i)),  # x tile
                pl.BlockSpec((C, 1), lambda b, i: (0, 0)),           # weight
                pl.BlockSpec((C, 1), lambda b, i: (0, 0)),           # bias
            ],
            out_specs=pl.BlockSpec((1, C, t_hw), lambda b, i: (b, 0, i)),
        ),
        compiler_params=pltpu.CompilerParams(
            dimension_semantics=("parallel", "parallel")),
        cost_estimate=cost,
    )(x3, w2, b2)

    if HW_pad != HW:
        out = out[:, :, :HW]
    # Free reshape back to (B, C, H, W) -- no transpose needed in this layout.
    return out.reshape(B, C, H, W)


def _layernorm_ref(x, w, b, *, bias_free, eps=1e-5):
    # Pure-JAX reference mirroring the PyTorch module.
    xt = jnp.transpose(x, (0, 2, 3, 1)).astype(jnp.float32)   # (B, H, W, C)
    mu = jnp.mean(xt, axis=-1, keepdims=True)
    var = jnp.mean((xt - mu) ** 2, axis=-1, keepdims=True)    # unbiased=False
    if bias_free:
        y = xt / jnp.sqrt(var + eps) * w
    else:
        y = (xt - mu) / jnp.sqrt(var + eps) * w + b
    return jnp.transpose(y, (0, 3, 1, 2)).astype(x.dtype)


if __name__ == "__main__":
    B, C, H, W = 2, 48, 16, 16          # small Restormer-like shape

    key = jax.random.PRNGKey(0)
    kx, kw, kb = jax.random.split(key, 3)
    x = jax.random.normal(kx, (B, C, H, W), dtype=jnp.float32)
    weight = 1.0 + 0.1 * jax.random.normal(kw, (C,), dtype=jnp.float32)
    bias = 0.1 * jax.random.normal(kb, (C,), dtype=jnp.float32)

    # WithBias variant
    y_wb = layernorm_pallas(x, weight, bias, bias_free=False)
    # BiasFree variant
    y_bf = layernorm_pallas(x, weight, bias_free=True)
    jax.block_until_ready((y_wb, y_bf))

    ref_wb = _layernorm_ref(x, weight, bias, bias_free=False)
    ref_bf = _layernorm_ref(x, weight, jnp.zeros_like(bias), bias_free=True)

    assert y_wb.shape == x.shape and y_bf.shape == x.shape
    assert jnp.allclose(y_wb, ref_wb, atol=1e-5, rtol=1e-5)
    assert jnp.allclose(y_bf, ref_bf, atol=1e-5, rtol=1e-5)
    print("KERNEL_OK")
</pallas_src>

<mosaic_0001>
module attributes {stable_mosaic.version = 11 : i64} {
  func.func @_layernorm_kernel(%arg0: i32, %arg1: i32, %arg2: memref<1x48x256xf32, #tpu.memory_space<vmem>>, %arg3: memref<48x1xf32, #tpu.memory_space<vmem>>, %arg4: memref<48x1xf32, #tpu.memory_space<vmem>>, %arg5: memref<1x48x256xf32, #tpu.memory_space<vmem>>) attributes {dimension_semantics = [#tpu.dimension_semantics<parallel>, #tpu.dimension_semantics<parallel>], iteration_bounds = array<i64: 2, 1>, scalar_prefetch = 0 : i64, scratch_operands = 0 : i64, tpu.core_type = #tpu.core_type<tc>, window_params = [{transform_indices = @transform_0, window_bounds = array<i64: 1, 48, 256>}, {pipeline_mode = #tpu.pipeline_mode<synchronous>, transform_indices = @transform_1, window_bounds = array<i64: 48, 1>}, {pipeline_mode = #tpu.pipeline_mode<synchronous>, transform_indices = @transform_2, window_bounds = array<i64: 48, 1>}, {transform_indices = @transform_3, window_bounds = array<i64: 1, 48, 256>}]} {
    %c0 = arith.constant 0 : index
    %c0_0 = arith.constant 0 : index
    %c0_1 = arith.constant 0 : index
    %0 = vector.load %arg2[%c0, %c0_0, %c0_1] : memref<1x48x256xf32, #tpu.memory_space<vmem>>, vector<1x48x256xf32>
    %cst = arith.constant dense<0.000000e+00> : vector<1x256xf32>
    %1 = vector.multi_reduction <add>, %0, %cst [1] : vector<1x48x256xf32> to vector<1x256xf32>
    %2 = vector.shape_cast %1 : vector<1x256xf32> to vector<1x1x256xf32>
    %cst_2 = arith.constant 0.020833334 : f32
    %3 = vector.broadcast %cst_2 : f32 to vector<1x1x256xf32>
    %4 = arith.mulf %2, %3 : vector<1x1x256xf32>
    %5 = vector.broadcast %4 : vector<1x1x256xf32> to vector<1x48x256xf32>
    %6 = arith.subf %0, %5 : vector<1x48x256xf32>
    %7 = arith.mulf %6, %6 : vector<1x48x256xf32>
    %cst_3 = arith.constant dense<0.000000e+00> : vector<1x256xf32>
    %8 = vector.multi_reduction <add>, %7, %cst_3 [1] : vector<1x48x256xf32> to vector<1x256xf32>
    %9 = vector.shape_cast %8 : vector<1x256xf32> to vector<1x1x256xf32>
    %cst_4 = arith.constant 0.020833334 : f32
    %10 = vector.broadcast %cst_4 : f32 to vector<1x1x256xf32>
    %11 = arith.mulf %9, %10 : vector<1x1x256xf32>
    %cst_5 = arith.constant 9.99999974E-6 : f32
    %12 = vector.broadcast %cst_5 : f32 to vector<1x1x256xf32>
    %13 = arith.addf %11, %12 : vector<1x1x256xf32>
    %14 = math.rsqrt %13 : vector<1x1x256xf32>
    %c0_6 = arith.constant 0 : index
    %c0_7 = arith.constant 0 : index
    %15 = vector.load %arg3[%c0_6, %c0_7] : memref<48x1xf32, #tpu.memory_space<vmem>>, vector<48x1xf32>
    %16 = vector.broadcast %14 : vector<1x1x256xf32> to vector<1x48x256xf32>
    %17 = arith.mulf %6, %16 : vector<1x48x256xf32>
    %18 = vector.shape_cast %15 : vector<48x1xf32> to vector<1x48x1xf32>
    %19 = vector.broadcast %18 : vector<1x48x1xf32> to vector<1x48x256xf32>
    %20 = arith.mulf %17, %19 : vector<1x48x256xf32>
    %c0_8 = arith.constant 0 : index
    %c0_9 = arith.constant 0 : index
    %21 = vector.load %arg4[%c0_8, %c0_9] : memref<48x1xf32, #tpu.memory_space<vmem>>, vector<48x1xf32>
    %22 = vector.shape_cast %21 : vector<48x1xf32> to vector<1x48x1xf32>
    %23 = vector.broadcast %22 : vector<1x48x1xf32> to vector<1x48x256xf32>
    %24 = arith.addf %20, %23 : vector<1x48x256xf32>
    %c0_10 = arith.constant 0 : index
    %c0_11 = arith.constant 0 : index
    %c0_12 = arith.constant 0 : index
    %25 = vector.load %arg5[%c0_10, %c0_11, %c0_12] : memref<1x48x256xf32, #tpu.memory_space<vmem>>, vector<1x48x256xf32>
    tpu.vector_store %arg5[%c0_10, %c0_11, %c0_12], %24 {strides = array<i32>} : memref<1x48x256xf32, #tpu.memory_space<vmem>>, vector<1x48x256xf32>,
    return
  }
  func.func @transform_0(%arg0: i32, %arg1: i32) -> (i32, i32, i32) {
    %c0_i32 = arith.constant 0 : i32
    %c0_i32_0 = arith.constant 0 : i32
    return %arg0, %c0_i32, %arg1 : i32, i32, i32
  }
  func.func @transform_1(%arg0: i32, %arg1: i32) -> (i32, i32) {
    %c0_i32 = arith.constant 0 : i32
    %c0_i32_0 = arith.constant 0 : i32
    %c0_i32_1 = arith.constant 0 : i32
    return %c0_i32, %c0_i32_0 : i32, i32
  }
  func.func @transform_2(%arg0: i32, %arg1: i32) -> (i32, i32) {
    %c0_i32 = arith.constant 0 : i32
    %c0_i32_0 = arith.constant 0 : i32
    %c0_i32_1 = arith.constant 0 : i32
    return %c0_i32, %c0_i32_0 : i32, i32
  }
  func.func @transform_3(%arg0: i32, %arg1: i32) -> (i32, i32, i32) {
    %c0_i32 = arith.constant 0 : i32
    %c0_i32_0 = arith.constant 0 : i32
    return %arg0, %c0_i32, %arg1 : i32, i32, i32
  }
}

</mosaic_0001>

<llo_original>
// kernel: tpu_custom_call.1
$region0: #{tpu_custom_call.1}
  #allocation0 [shape = 'u32[]', space=smem, size = 0x4, offset = 0x4, fixed_abs, tag = 'smem constant byte address 0x4 - core index']
  #allocation1 [shape = 'u32[144,128]{1,0:T(1,128)}', space=vmem, size = 0x12000, scoped, tag = 'internal scratch']
  %s0 = inlined_call_operand.hbm [shape: f32[2,48,256], index: 0, kind: input, shape index: {}]
  %s1 = inlined_call_operand.vmem [shape: f32[48,1], index: 1, kind: input, shape index: {}]
  %s2 = inlined_call_operand.vmem [shape: f32[48,1], index: 2, kind: input, shape index: {}]
  %s3 = inlined_call_operand.hbm [shape: f32[2,48,256], index: 3, kind: output, shape index: {}]
  %s4 = sld [smem:[#allocation0]]
  $region49: #{tpu_custom_call.1} parent=0
    _
  %s6 = ssub.s32 1, %s4
  %s7 = scalar_select 0, %s6, %s4
  $region1: #{tpu_custom_call.1} parent=0
    #allocation2 [shape = 'u8[98304]{0}', space=vmem, size = 0x18000, scoped, tag = 'input window, operand 0']
    #allocation3 [shape = 's32[2]{0}', space=sflag, size = 0x8, scoped, tag = 'scoped memory for tpu_custom_call.1']
    #allocation4 [shape = 's32[2]{0}', space=sflag, size = 0x8, scoped, tag = 'scoped memory for tpu_custom_call.1']
    #allocation5 [shape = 'u8[98304]{0}', space=vmem, size = 0x18000, scoped, tag = 'output window, operand 0']
    %8 = vsyncpa [#allocation3], 0
    %s9 = scalar_lea.sflag [#allocation3], 1
    %10 = vsyncpa %s9, 0
    %11 = vsyncpa [#allocation4], 0
    %s12 = scalar_lea.sflag [#allocation4], 1
    %13 = vsyncpa %s12, 0
    loop: start=0, step=1, limit=4
    $region2: #{tpu_custom_call.1} parent=1 // loop_pre_header
      _
    $region3: #{tpu_custom_call.1} parent=1 // loop_header
      %s15 = sphi 0, %s19
      %p16 = scmp.ge.s32.totalorder %s15, 4
      %s22 = sphi 0, %s34
      %s23 = sphi 0, %s30
      %s24 = sphi 0, %s22
      %s25 = sphi 0, %s23
      %s26 = sphi 0, %s24
      %s27 = sphi 0, %s25
      %s39 = sphi 0, %s41
      %s42 = sphi 0, %s39
      %s43 = sphi 0, %s42
      %s59 = sphi 0, %s43
      %s63 = sphi 0, %s63
      %s65 = sphi 0, %s63
      %s66 = sphi 0, %s65
      %s80 = sphi 0, %s66
      %s84 = sphi 0, %s84
      %s86 = sphi 0, %s84
      %s87 = sphi 0, %s86
      %s101 = sphi 0, %s87
      %s109 = sphi 0, %s111
      %s112 = sphi 0, %s109
      %s113 = sphi 0, %s112
      %s129 = sphi 0, %s113
    $region4: #{tpu_custom_call.1} parent=1 // loop_header_branch
      %18 = sbr.rel (%p16) target = $region8
    $region5: #{tpu_custom_call.1} parent=1 // loop_body
      %s20 = ssub.s32 %s15, 1
      %s21 = ssub.s32 %s15, 2
      %s28 = sadd.s32 1, %s23
      %p29 = scmp.ge.s32.totalorder %s28, 1
      %s30 = scalar_select %p29, 0, %s28
      %s31 = sadd.s32 1, %s22
      %s32 = scalar_select %p29, %s31, %s22
      %p33 = scmp.ge.s32.totalorder %s32, 2
      %s34 = scalar_select %p33, 0, %s32
      %s35 = ssub.s32 %s22, %s34
      %s36 = ssub.s32 %s23, %s30
      %s37 = sor.u32 %s35, %s36
      %p38 = scmp.eq.s32.totalorder %s37, 0
      %s40 = sadd.s32 %s39, 1
      %s41 = scalar_select %p38, %s39, %s40
      %p44 = pneg %p38
      %p45 = scmp.eq.s32.totalorder %s15, 1
      %p46 = por %p44, %p45
      %p47 = scmp.ne.s32.totalorder %s39, %s42
      %p48 = scmp.eq.s32.totalorder %s15, 0
      %p49 = por %p47, %p48
      %p50 = scmp.ne.s32.totalorder %s39, %s42
      %p51 = scmp.eq.s32.totalorder %s20, 1
      %p52 = por %p50, %p51
      %p53 = scmp.ne.s32.totalorder %s42, %s43
      %p54 = scmp.eq.s32.totalorder %s20, 0
      %p55 = por %p53, %p54
      %p56 = scmp.ne.s32.totalorder %s42, %s43
      %p57 = scmp.eq.s32.totalorder %s21, 1
      %p58 = por %p56, %p57
      %p60 = scmp.ne.s32.totalorder %s43, %s59
      %p61 = scmp.eq.s32.totalorder %s21, 0
      %p62 = por %p60, %p61
      %s64 = sadd.s32 %s63, 1
      %p67 = scmp.eq.s32.totalorder %s15, 1
      %p68 = scmp.ne.s32.totalorder %s63, %s65
      %p69 = scmp.eq.s32.totalorder %s15, 0
      %p70 = por %p68, %p69
      %p71 = scmp.ne.s32.totalorder %s63, %s65
      %p72 = scmp.eq.s32.totalorder %s20, 1
      %p73 = por %p71, %p72
      %p74 = scmp.ne.s32.totalorder %s65, %s66
      %p75 = scmp.eq.s32.totalorder %s20, 0
      %p76 = por %p74, %p75
      %p77 = scmp.ne.s32.totalorder %s65, %s66
      %p78 = scmp.eq.s32.totalorder %s21, 1
      %p79 = por %p77, %p78
      %p81 = scmp.ne.s32.totalorder %s66, %s80
      %p82 = scmp.eq.s32.totalorder %s21, 0
      %p83 = por %p81, %p82
      %s85 = sadd.s32 %s84, 1
      %p88 = scmp.eq.s32.totalorder %s15, 1
      %p89 = scmp.ne.s32.totalorder %s84, %s86
      %p90 = scmp.eq.s32.totalorder %s15, 0
      %p91 = por %p89, %p90
      %p92 = scmp.ne.s32.totalorder %s84, %s86
      %p93 = scmp.eq.s32.totalorder %s20, 1
      %p94 = por %p92, %p93
      %p95 = scmp.ne.s32.totalorder %s86, %s87
      %p96 = scmp.eq.s32.totalorder %s20, 0
      %p97 = por %p95, %p96
      %p98 = scmp.ne.s32.totalorder %s86, %s87
      %p99 = scmp.eq.s32.totalorder %s21, 1
      %p100 = por %p98, %p99
      %p102 = scmp.ne.s32.totalorder %s87, %s101
      %p103 = scmp.eq.s32.totalorder %s21, 0
      %p104 = por %p102, %p103
      %s105 = ssub.s32 %s22, %s34
      %s106 = ssub.s32 %s23, %s30
      %s107 = sor.u32 %s105, %s106
      %p108 = scmp.eq.s32.totalorder %s107, 0
      %s110 = sadd.s32 %s109, 1
      %s111 = scalar_select %p108, %s109, %s110
      %p114 = pneg %p108
      %p115 = scmp.eq.s32.totalorder %s15, 1
      %p116 = por %p114, %p115
      %p117 = scmp.ne.s32.totalorder %s109, %s112
      %p118 = scmp.eq.s32.totalorder %s15, 0
      %p119 = por %p117, %p118
      %p120 = scmp.ne.s32.totalorder %s109, %s112
      %p121 = scmp.eq.s32.totalorder %s20, 1
      %p122 = por %p120, %p121
      %p123 = scmp.ne.s32.totalorder %s112, %s113
      %p124 = scmp.eq.s32.totalorder %s20, 0
      %p125 = por %p123, %p124
      %p126 = scmp.ne.s32.totalorder %s112, %s113
      %p127 = scmp.eq.s32.totalorder %s21, 1
      %p128 = por %p126, %p127
      %p130 = scmp.ne.s32.totalorder %s113, %s129
      %p131 = scmp.eq.s32.totalorder %s21, 0
      %p132 = por %p130, %p131
      %p133 = scmp.le.s32.totalorder 1, %s15
      %p134 = scmp.lt.s32.totalorder %s15, 3
      %p135 = pnand %p133, %p134
      %p136 = pneg %p135
      // Predicated region
      $region9: #{tpu_custom_call.1} parent=5 // pred_check
        _
      $region10: #{tpu_custom_call.1} parent=5 // pred_check_branch
        %138 = sbr.rel (%p135) target = $region12
      $region11: #{tpu_custom_call.1} parent=5 // pred_region
        %s139 = ssub.s32 %s15, 1
        // Predicated region
        $region13: #{tpu_custom_call.1} parent=11 // pred_check
          %p140 = pneg %p76
        $region14: #{tpu_custom_call.1} parent=11 // pred_check_branch
          %142 = sbr.rel (%p140) target = $region16
        $region15: #{tpu_custom_call.1} parent=11 // pred_region
          _
        $region16: #{tpu_custom_call.1} parent=11 // pred_fallthru
          _
        // Predicated region
        $region17: #{tpu_custom_call.1} parent=11 // pred_check
          %p143 = pneg %p97
        $region18: #{tpu_custom_call.1} parent=11 // pred_check_branch
          %145 = sbr.rel (%p143) target = $region20
        $region19: #{tpu_custom_call.1} parent=11 // pred_region
          _
        $region20: #{tpu_custom_call.1} parent=11 // pred_fallthru
          _
      $region12: #{tpu_custom_call.1} parent=5 // pred_fallthru
        _
      %p146 = scmp.lt.s32.totalorder %s15, 2
      // Predicated region
      $region21: #{tpu_custom_call.1} parent=5 // pred_check
        %p147 = pneg %p146
      $region22: #{tpu_custom_call.1} parent=5 // pred_check_branch
        %149 = sbr.rel (%p147) target = $region24
      $region23: #{tpu_custom_call.1} parent=5 // pred_region
        // Predicated region
        $region25: #{tpu_custom_call.1} parent=23 // pred_check
          %p150 = pneg %p49
        $region26: #{tpu_custom_call.1} parent=23 // pred_check_branch
          %152 = sbr.rel (%p150) target = $region28
        $region27: #{tpu_custom_call.1} parent=23 // pred_region
          %s153 = sand.u32 %s39, 1
          %s154 = scalar_lea.sflag [#allocation3], %s153
          %s155 = sand.u32 %s39, 1
          %s156 = smul.addr %s155, 96
          %s157 = scalar_lea.vmem [#allocation2], %s156
          %s158 = smul.u32 2, %s23
          %s160 = ssub.s32 1536, 1536
          %161 = vsyncadd %s154, %s160
          %s162 = smul.addr %s22, 12
          %s163 = sadd.s32 %s158, %s162
          %s164 = smul.addr %s163, 128
          %s165 = scalar_lea.hbm %s0, %s164
          %s166 = sshll.u32 %s157, 4
          %s167 = int_to_ptr.vmem [resolvable:$true] %s166
          %172 = dma.hbm_to_vmem [thread:$0]  %s165, 1536, %s167, %s154, 256, 256, 16
        $region28: #{tpu_custom_call.1} parent=23 // pred_fallthru
          _
      $region24: #{tpu_custom_call.1} parent=5 // pred_fallthru
        _
      %p173 = scmp.le.s32.totalorder 1, %s15
      %p174 = scmp.lt.s32.totalorder %s15, 3
      %p175 = pnand %p173, %p174
      %p176 = pneg %p175
      // Predicated region
      $region29: #{tpu_custom_call.1} parent=5 // pred_check
        _
      $region30: #{tpu_custom_call.1} parent=5 // pred_check_branch
        %178 = sbr.rel (%p175) target = $region32
      $region31: #{tpu_custom_call.1} parent=5 // pred_region
        %s179 = ssub.s32 %s15, 1
        %s180 = sand.u32 %s42, 1
        %s181 = scalar_lea.sflag [#allocation3], %s180
        %s182 = sand.u32 %s42, 1
        %s183 = smul.addr %s182, 96
        %s184 = scalar_lea.vmem [#allocation2], %s183
        // Predicated region
        $region33: #{tpu_custom_call.1} parent=31 // pred_check
          %p185 = pneg %p55
        $region34: #{tpu_custom_call.1} parent=31 // pred_check_branch
          %187 = sbr.rel (%p185) target = $region36
        $region35: #{tpu_custom_call.1} parent=31 // pred_region
          %188 = dma.done %s181, 1536
        $region36: #{tpu_custom_call.1} parent=31 // pred_fallthru
          _
        %s189 = sand.u32 %s42, 1
        %s190 = scalar_lea.sflag [#allocation3], %s189
        %s191 = sand.u32 %s42, 1
        %s192 = smul.addr %s191, 96
        %s193 = scalar_lea.vmem [#allocation2], %s192
        %p194 = pneg %p55
        %p195 = pneg %p52
        %p196 = pneg %p76
        %p197 = pneg %p73
        %p198 = pneg %p97
        %p199 = pneg %p94
        %p200 = pneg %p125
        %p201 = pneg %p122
        %s202 = sand.u32 %s112, 1
        %s203 = scalar_lea.sflag [#allocation4], %s202
        %s204 = sand.u32 %s112, 1
        %s205 = smul.addr %s204, 96
        %s206 = scalar_lea.vmem [#allocation5], %s205
        %s207 = smul.u32 2, %s25
        %s208 = smul.u32 2, %s25
        %v209 = vld [vmem:[%s184] sm:$0xff]
        %v210 = vld [vmem:[%s184 + $0x8] sm:$0xff]
        %v211 = vld [vmem:[%s184 + $0x10] sm:$0xff]
        %v212 = vld [vmem:[%s184 + $0x18] sm:$0xff]
        %v213 = vld [vmem:[%s184 + $0x20] sm:$0xff]
        %v214 = vld [vmem:[%s184 + $0x28] sm:$0xff]
        %v215 = vld [vmem:[%s184 + $0x30] sm:$0xff]
        %v216 = vld [vmem:[%s184 + $0x38] sm:$0xff]
        %v217 = vld [vmem:[%s184 + $0x40] sm:$0xff]
        %v218 = vld [vmem:[%s184 + $0x48] sm:$0xff]
        %v219 = vld [vmem:[%s184 + $0x50] sm:$0xff]
        %v220 = vld [vmem:[%s184 + $0x58] sm:$0xff]
        %v221 = vadd.f32 %v209, %v211
        %v222 = vadd.f32 %v221, %v213
        %v223 = vadd.f32 %v222, %v215
        %v224 = vadd.f32 %v223, %v217
        %v225 = vadd.f32 %v224, %v219
        %v226 = vrot.slane %v225, 4
        %v227 = vadd.f32 %v225, %v226
        %v228 = vrot.slane %v227, 2
        %v229 = vadd.f32 %v227, %v228
        %v230 = vrot.slane %v229, 1
        %v231 = vadd.f32 %v229, %v230
        %v232 = vadd.f32 %v210, %v212
        %v233 = vadd.f32 %v232, %v214
        %v234 = vadd.f32 %v233, %v216
        %v235 = vadd.f32 %v234, %v218
        %v236 = vadd.f32 %v235, %v220
        %v237 = vrot.slane %v236, 4
        %v238 = vadd.f32 %v236, %v237
        %v239 = vrot.slane %v238, 2
        %v240 = vadd.f32 %v238, %v239
        %v241 = vrot.slane %v240, 1
        %v242 = vadd.f32 %v240, %v241
        %v243 = vmul.f32 %v231, 0.020833334
        %v244 = vmul.f32 %v242, 0.020833334
        %v245 = vsub.f32 %v209, %v243
        %v246 = vsub.f32 %v210, %v244
        %v247 = vsub.f32 %v211, %v243
        %v248 = vsub.f32 %v212, %v244
        %v249 = vsub.f32 %v213, %v243
        %v250 = vsub.f32 %v214, %v244
        %v251 = vsub.f32 %v215, %v243
        %v252 = vsub.f32 %v216, %v244
        %v253 = vsub.f32 %v217, %v243
        %v254 = vsub.f32 %v218, %v244
        %v255 = vsub.f32 %v219, %v243
        %v256 = vsub.f32 %v220, %v244
        %v257 = vmul.f32 %v245, %v245
        %v258 = vmul.f32 %v246, %v246
        %v259 = vmul.f32 %v247, %v247
        %v260 = vmul.f32 %v248, %v248
        %v261 = vmul.f32 %v249, %v249
        %v262 = vmul.f32 %v250, %v250
        %v263 = vmul.f32 %v251, %v251
        %v264 = vmul.f32 %v252, %v252
        %v265 = vmul.f32 %v253, %v253
        %v266 = vmul.f32 %v254, %v254
        %v267 = vmul.f32 %v255, %v255
        %v268 = vmul.f32 %v256, %v256
        %v269 = vadd.f32 %v257, %v259
        %v270 = vadd.f32 %v269, %v261
        %v271 = vadd.f32 %v270, %v263
        %v272 = vadd.f32 %v271, %v265
        %v273 = vadd.f32 %v272, %v267
        %v274 = vrot.slane %v273, 4
        %v275 = vadd.f32 %v273, %v274
        %v276 = vrot.slane %v275, 2
        %v277 = vadd.f32 %v275, %v276
        %v278 = vrot.slane %v277, 1
        %v279 = vadd.f32 %v277, %v278
        %v280 = vadd.f32 %v258, %v260
        %v281 = vadd.f32 %v280, %v262
        %v282 = vadd.f32 %v281, %v264
        %v283 = vadd.f32 %v282, %v266
        %v284 = vadd.f32 %v283, %v268
        %v285 = vrot.slane %v284, 4
        %v286 = vadd.f32 %v284, %v285
        %v287 = vrot.slane %v286, 2
        %v288 = vadd.f32 %v286, %v287
        %v289 = vrot.slane %v288, 1
        %v290 = vadd.f32 %v288, %v289
        %v291 = vmul.f32 %v279, 0.020833334
        %v292 = vmul.f32 %v290, 0.020833334
        %v293 = vadd.f32 %v291, 1e-05
        %v294 = vadd.f32 %v292, 1e-05
        %v295 = vrsqrt.pop %v293
        %v296 = vrsqrt.pop %v294
        %v297 = vld [vmem:[%s1] sm:$0xff]
        %v298 = vld [vmem:[%s1 + $0x8] sm:$0xff]
        %v299 = vld [vmem:[%s1 + $0x10] sm:$0xff]
        %v300 = vld [vmem:[%s1 + $0x18] sm:$0xff]
        %v301 = vld [vmem:[%s1 + $0x20] sm:$0xff]
        %v302 = vld [vmem:[%s1 + $0x28] sm:$0xff]
        %v303 = vmul.f32 %v245, %v295
        %v304 = vmul.f32 %v246, %v296
        %v305 = vmul.f32 %v247, %v295
        %v306 = vmul.f32 %v248, %v296
        %v307 = vmul.f32 %v249, %v295
        %v308 = vmul.f32 %v250, %v296
        %v309 = vmul.f32 %v251, %v295
        %v310 = vmul.f32 %v252, %v296
        %v311 = vmul.f32 %v253, %v295
        %v312 = vmul.f32 %v254, %v296
        %v313 = vmul.f32 %v255, %v295
        %v314 = vmul.f32 %v256, %v296
        %316 = vset.pattern.permute.xlu0 0
        %317 = vperm.xlu0 %316, %v297
        %v318 = vpop.permute.xlu0 %317
        %321 = vset.pattern.permute.xlu0 0
        %322 = vperm.xlu0 %321, %v298
        %v323 = vpop.permute.xlu0 %322
        %326 = vset.pattern.permute.xlu0 0
        %327 = vperm.xlu0 %326, %v299
        %v328 = vpop.permute.xlu0 %327
        %331 = vset.pattern.permute.xlu0 0
        %332 = vperm.xlu0 %331, %v300
        %v333 = vpop.permute.xlu0 %332
        %336 = vset.pattern.permute.xlu0 0
        %337 = vperm.xlu0 %336, %v301
        %v338 = vpop.permute.xlu0 %337
        %341 = vset.pattern.permute.xlu0 0
        %342 = vperm.xlu0 %341, %v302
        %v343 = vpop.permute.xlu0 %342
        %v345 = vmul.f32 %v303, %v318
        %v346 = vmul.f32 %v304, %v318
        %v347 = vmul.f32 %v305, %v323
        %v348 = vmul.f32 %v306, %v323
        %v349 = vmul.f32 %v307, %v328
        %v350 = vmul.f32 %v308, %v328
        %v351 = vmul.f32 %v309, %v333
        %v352 = vmul.f32 %v310, %v333
        %v353 = vmul.f32 %v311, %v338
        %v354 = vmul.f32 %v312, %v338
        %v355 = vmul.f32 %v313, %v343
        %v356 = vmul.f32 %v314, %v343
        %v357 = vld [vmem:[%s2] sm:$0xff]
        %v358 = vld [vmem:[%s2 + $0x8] sm:$0xff]
        %v359 = vld [vmem:[%s2 + $0x10] sm:$0xff]
        %v360 = vld [vmem:[%s2 + $0x18] sm:$0xff]
        %v361 = vld [vmem:[%s2 + $0x20] sm:$0xff]
        %v362 = vld [vmem:[%s2 + $0x28] sm:$0xff]
        %364 = vset.pattern.permute.xlu0 0
        %365 = vperm.xlu0 %364, %v357
        %v366 = vpop.permute.xlu0 %365
        %369 = vset.pattern.permute.xlu0 0
        %370 = vperm.xlu0 %369, %v358
        %v371 = vpop.permute.xlu0 %370
        %374 = vset.pattern.permute.xlu0 0
        %375 = vperm.xlu0 %374, %v359
        %v376 = vpop.permute.xlu0 %375
        %379 = vset.pattern.permute.xlu0 0
        %380 = vperm.xlu0 %379, %v360
        %v381 = vpop.permute.xlu0 %380
        %384 = vset.pattern.permute.xlu0 0
        %385 = vperm.xlu0 %384, %v361
        %v386 = vpop.permute.xlu0 %385
        %389 = vset.pattern.permute.xlu0 0
        %390 = vperm.xlu0 %389, %v362
        %v391 = vpop.permute.xlu0 %390
        %v393 = vadd.f32 %v345, %v366
        %v394 = vadd.f32 %v346, %v366
        %v395 = vadd.f32 %v347, %v371
        %v396 = vadd.f32 %v348, %v371
        %v397 = vadd.f32 %v349, %v376
        %v398 = vadd.f32 %v350, %v376
        %v399 = vadd.f32 %v351, %v381
        %v400 = vadd.f32 %v352, %v381
        %v401 = vadd.f32 %v353, %v386
        %v402 = vadd.f32 %v354, %v386
        %v403 = vadd.f32 %v355, %v391
        %v404 = vadd.f32 %v356, %v391
        %405 = vst [vmem:[%s206] sm:$0xff] %v393
        %406 = vst [vmem:[%s206 + $0x8] sm:$0xff] %v394
        %407 = vst [vmem:[%s206 + $0x10] sm:$0xff] %v395
        %408 = vst [vmem:[%s206 + $0x18] sm:$0xff] %v396
        %409 = vst [vmem:[%s206 + $0x20] sm:$0xff] %v397
        %410 = vst [vmem:[%s206 + $0x28] sm:$0xff] %v398
        %411 = vst [vmem:[%s206 + $0x30] sm:$0xff] %v399
        %412 = vst [vmem:[%s206 + $0x38] sm:$0xff] %v400
        %413 = vst [vmem:[%s206 + $0x40] sm:$0xff] %v401
        %414 = vst [vmem:[%s206 + $0x48] sm:$0xff] %v402
        %415 = vst [vmem:[%s206 + $0x50] sm:$0xff] %v403
        %416 = vst [vmem:[%s206 + $0x58] sm:$0xff] %v404
        %s417 = sand.u32 %s112, 1
        %s418 = scalar_lea.sflag [#allocation4], %s417
        %s419 = sand.u32 %s112, 1
        %s420 = smul.addr %s419, 96
        %s421 = scalar_lea.vmem [#allocation5], %s420
        // Predicated region
        $region37: #{tpu_custom_call.1} parent=31 // pred_check
          %p422 = pneg %p122
        $region38: #{tpu_custom_call.1} parent=31 // pred_check_branch
          %424 = sbr.rel (%p422) target = $region40
        $region39: #{tpu_custom_call.1} parent=31 // pred_region
          %s425 = smul.u32 2, %s25
          %s427 = ssub.s32 1536, 1536
          %428 = vsyncadd %s418, %s427
          %s429 = smul.addr %s24, 12
          %s430 = sadd.s32 %s425, %s429
          %s431 = smul.addr %s430, 128
          %s432 = scalar_lea.hbm %s3, %s431
          %s433 = sshll.u32 %s421, 4
          %s434 = int_to_ptr.vmem [resolvable:$true] %s433
          %439 = dma.vmem_to_hbm [thread:$0]  %s434, 1536, %s432, %s418, 256, 256, 16
        $region40: #{tpu_custom_call.1} parent=31 // pred_fallthru
          _
      $region32: #{tpu_custom_call.1} parent=5 // pred_fallthru
        _
      %p440 = scmp.le.s32.totalorder 2, %s15
      // Predicated region
      $region41: #{tpu_custom_call.1} parent=5 // pred_check
        %p441 = pneg %p440
      $region42: #{tpu_custom_call.1} parent=5 // pred_check_branch
        %443 = sbr.rel (%p441) target = $region44
      $region43: #{tpu_custom_call.1} parent=5 // pred_region
        %s444 = ssub.s32 %s15, 2
        // Predicated region
        $region45: #{tpu_custom_call.1} parent=43 // pred_check
          %p445 = pneg %p128
        $region46: #{tpu_custom_call.1} parent=43 // pred_check_branch
          %447 = sbr.rel (%p445) target = $region48
        $region47: #{tpu_custom_call.1} parent=43 // pred_region
          %s448 = sand.u32 %s113, 1
          %s449 = scalar_lea.sflag [#allocation4], %s448
          %s450 = sand.u32 %s113, 1
          %s451 = smul.addr %s450, 96
          %s452 = scalar_lea.vmem [#allocation5], %s451
          %453 = dma.done %s449, 1536
        $region48: #{tpu_custom_call.1} parent=43 // pred_fallthru
          _
      $region44: #{tpu_custom_call.1} parent=5 // pred_fallthru
        _
    $region6: #{tpu_custom_call.1} parent=1 // loop_footer
      %s19 = sadd.s32 1, %s15
    $region7: #{tpu_custom_call.1} parent=1 // loop_footer_branch
      %14 = sbr.rel target = $region3
    $region8: #{tpu_custom_call.1} parent=1 // loop_exit
      _
    %454 = vsyncpa [#allocation3], 1
    %s455 = scalar_lea.sflag [#allocation3], 1
    %456 = vsyncpa %s455, 1
    %457 = vsyncpa [#allocation4], 1
    %s458 = scalar_lea.sflag [#allocation4], 1
    %459 = vsyncpa %s458, 1

</llo_original>
